<compile_context>
chip_gen: v6e
topology: v6e:2x2x1
jax: 0.10.0
libtpu: 0.0.40
codegen_flags: <defaults>
</compile_context>

<pallas_src>
import math

import jax
import jax.numpy as jnp
from jax.experimental import pallas as pl
from jax.experimental.pallas import tpu as pltpu

NDIM = 128                      # embedding dim, lane-aligned (multiple of 128 assumed)
_GATHER_ROWS = 32               # rows per grid step in the DMA-gather fallback
_FB_ROWS = 16                   # batch rows per grid step in the fused DMA functor fallback
_RESIDENT_MAX_ROWS = 4096       # one-hot/resident paths while the (bf16) pool fits VMEM easily
_VMEM_LIMIT = 48 * 1024 * 1024  # > default scoped limit, < v7x 64 MiB physical


def _round_up(x, m):
    return ((x + m - 1) // m) * m


# ---------------- resident (VMEM) exact row gather: one-hot on the MXU ----------------

def _gather_resident_kernel(idx_ref, table_ref, o_ref):
    tm = o_ref.shape[0]
    V_pad, _ = table_ref.shape
    idx = idx_ref[...]                                   # (tm, 1) i32
    t = table_ref[...]                                   # (V_pad, D) f32, VMEM-resident
    # Exact 3-way bf16 split of the f32 table: one-hot selection on the MXU reproduces the
    # stored f32 rows to ~1 ulp (no dependence on f32-matmul precision modes).
    t_hi = t.astype(jnp.bfloat16)
    r1 = t - t_hi.astype(jnp.float32)
    t_mid = r1.astype(jnp.bfloat16)
    t_lo = (r1 - t_mid.astype(jnp.float32)).astype(jnp.bfloat16)
    vocab = jax.lax.broadcasted_iota(jnp.int32, (tm, V_pad), 1)
    onehot = (vocab == idx).astype(jnp.bfloat16)         # padded idx rows select row 0 (harmless)
    out = (jnp.dot(onehot, t_hi, preferred_element_type=jnp.float32)
           + jnp.dot(onehot, t_mid, preferred_element_type=jnp.float32)
           + jnp.dot(onehot, t_lo, preferred_element_type=jnp.float32))
    o_ref[...] = out.astype(o_ref.dtype)


def _pick_tm(B):
    tm = min(256, _round_up(max(B, 8), 8))
    # keep >=2 grid steps when B allows so v7x's second TensorCore is not idle
    if tm == 256 and _round_up(B, 128) < 512:
        tm = 128
    return tm


def _gather_resident(table, indices):
    B = int(indices.shape[0])
    V, D = table.shape
    V_pad = _round_up(V, 256)
    table_pad = table if V == V_pad else jnp.zeros((V_pad, D), table.dtype).at[:V].set(table)
    tm = _pick_tm(B)
    B_pad = _round_up(max(B, tm), tm)
    idx = jnp.zeros((B_pad, 1), jnp.int32).at[:B, 0].set(indices.astype(jnp.int32))
    out = pl.pallas_call(
        _gather_resident_kernel,
        out_shape=jax.ShapeDtypeStruct((B_pad, D), table.dtype),
        grid=(B_pad // tm,),
        in_specs=[pl.BlockSpec((tm, 1), lambda i: (i, 0)),
                  pl.BlockSpec((V_pad, D), lambda i: (0, 0))],
        out_specs=pl.BlockSpec((tm, D), lambda i: (i, 0)),
        compiler_params=pltpu.CompilerParams(
            dimension_semantics=("parallel",), vmem_limit_bytes=_VMEM_LIMIT),
    )(idx, table_pad)
    return out[:B]


# ---------------- DMA row gather (huge-vocabulary fallback) ----------------

def _gather_dma_kernel(idx_ref, table_ref, out_ref, sem):
    # 32 indexed rows per grid step, DMA'd from the HBM table into the (32, D) output tile;
    # all 32 row-DMAs are in flight before the first wait.
    base = pl.program_id(0) * _GATHER_ROWS
    copies = []
    for r in range(_GATHER_ROWS):                        # static unroll
        cp = pltpu.make_async_copy(
            table_ref.at[pl.ds(idx_ref[base + r], 1), :],
            out_ref.at[pl.ds(r, 1), :],
            sem.at[r])
        cp.start()
        copies.append(cp)
    for cp in copies:
        cp.wait()


def _gather_dma(table, indices):
    B = int(indices.shape[0])
    _, D = table.shape
    B_pad = _round_up(max(B, _GATHER_ROWS), _GATHER_ROWS)
    idx = jnp.zeros((B_pad,), jnp.int32).at[:B].set(indices.astype(jnp.int32))
    out = pl.pallas_call(
        _gather_dma_kernel,
        out_shape=jax.ShapeDtypeStruct((B_pad, D), table.dtype),
        grid_spec=pltpu.PrefetchScalarGridSpec(
            num_scalar_prefetch=1,
            grid=(B_pad // _GATHER_ROWS,),
            in_specs=[pl.BlockSpec(memory_space=pl.ANY)],   # table stays in HBM; rows are DMA'd
            out_specs=pl.BlockSpec((_GATHER_ROWS, D), lambda i, idx: (i, 0)),
            scratch_shapes=[pltpu.SemaphoreType.DMA((_GATHER_ROWS,))],
        ),
        compiler_params=pltpu.CompilerParams(dimension_semantics=("parallel",)),
    )(idx, table)
    return out[:B]


def gather_embeddings(table, indices):
    """Row gather. table: [V, D], indices: [B] int -> [B, D]."""
    V, _ = table.shape
    if V <= _RESIDENT_MAX_ROWS:
        return _gather_resident(table, indices)
    return _gather_dma(table, indices)


# ---------------- functor model: resident path with onehot @ (table @ W) fold ----------------

def _functor_resident_kernel(idx_ref, tW_ref, b_ref, o_ref):
    tm, D = o_ref.shape
    arity, V_pad, _ = tW_ref.shape
    idx = idx_ref[...]                                             # (tm, arity) i32
    vocab = jax.lax.broadcasted_iota(jnp.int32, (tm, V_pad), 1)
    acc = jnp.zeros((tm, D), jnp.float32)
    for a in range(arity):                                         # arity is small & static
        onehot = (vocab == idx[:, a:a + 1]).astype(jnp.bfloat16)   # (tm, V_pad)
        acc = acc + jnp.dot(onehot, tW_ref[a],                     # fold: one matmul per arity
                            preferred_element_type=jnp.float32)
    o_ref[...] = acc + b_ref[...]


def _functor_resident(tW_bf, bias, idx):
    """tW_bf: [arity, V_pad, D] bf16 (= pool_bf @ W_a), bias: [1, D] f32, idx: [B, arity]."""
    B, arity = idx.shape
    _, V_pad, D = tW_bf.shape
    tm = _pick_tm(B)
    B_pad = _round_up(max(B, tm), tm)
    idx_pad = jnp.zeros((B_pad, arity), jnp.int32).at[:B].set(idx.astype(jnp.int32))
    out = pl.pallas_call(
        _functor_resident_kernel,
        out_shape=jax.ShapeDtypeStruct((B_pad, D), jnp.float32),
        grid=(B_pad // tm,),
        in_specs=[pl.BlockSpec((tm, arity), lambda i: (i, 0)),
                  pl.BlockSpec((arity, V_pad, D), lambda i: (0, 0, 0)),
                  pl.BlockSpec((1, D), lambda i: (0, 0))],
        out_specs=pl.BlockSpec((tm, D), lambda i: (i, 0)),
        compiler_params=pltpu.CompilerParams(
            dimension_semantics=("parallel",), vmem_limit_bytes=_VMEM_LIMIT),
    )(idx_pad, tW_bf, bias)
    return out[:B]


def _fold_table_w(pool_bf, w3_bf):
    """Precompute tableW_a = pool_bf @ W_a once per (group, call) wrapper-side."""
    arity = w3_bf.shape[0]
    return jnp.stack([jnp.dot(pool_bf, w3_bf[a], preferred_element_type=jnp.float32)
                      for a in range(arity)]).astype(jnp.bfloat16)


# ---------------- functor model: fused large-vocab fallback (DMA rows inside the kernel) -----

def _make_fallback_kernel(arity, tm, D):
    def kernel(idx_ref, table_ref, w_ref, b_ref, o_ref, x_buf, sem):
        # DMA the arity argument rows of this tile from the HBM table straight into VMEM
        # scratch (all tm*arity row-DMAs in flight before the first wait), then matmul.
        base = pl.program_id(0) * tm
        copies = []
        for r in range(tm):                                        # static unroll
            for a in range(arity):
                cp = pltpu.make_async_copy(
                    table_ref.at[pl.ds(idx_ref[(base + r) * arity + a], 1), :],
                    x_buf.at[a, pl.ds(r, 1), :],
                    sem.at[a, r])
                cp.start()
                copies.append(cp)
        for cp in copies:
            cp.wait()
        acc = jnp.zeros((tm, D), jnp.float32)
        for a in range(arity):
            acc = acc + jnp.dot(x_buf[a].astype(jnp.bfloat16), w_ref[a],
                                preferred_element_type=jnp.float32)
        o_ref[...] = acc + b_ref[...]
    return kernel


def _functor_fallback(table, idx, w3_bf, bias):
    """table: [V, D] f32 (HBM), idx: [B, arity], w3_bf: [arity, D, D] bf16, bias: [1, D] f32."""
    B, arity = idx.shape
    V, D = table.shape
    tm = _FB_ROWS
    B_pad = _round_up(max(B, tm), tm)
    idx_flat = jnp.zeros((B_pad * arity,), jnp.int32).at[:B * arity].set(
        idx.astype(jnp.int32).reshape(-1))                         # 1-D: cheap SMEM footprint
    kernel = _make_fallback_kernel(arity, tm, D)
    out = pl.pallas_call(
        kernel,
        out_shape=jax.ShapeDtypeStruct((B_pad, D), jnp.float32),
        grid_spec=pltpu.PrefetchScalarGridSpec(
            num_scalar_prefetch=1,
            grid=(B_pad // tm,),
            in_specs=[pl.BlockSpec(memory_space=pl.ANY),           # table stays in HBM
                      pl.BlockSpec((arity, D, D), lambda i, idx: (0, 0, 0)),
                      pl.BlockSpec((1, D), lambda i, idx: (0, 0))],
            out_specs=pl.BlockSpec((tm, D), lambda i, idx: (i, 0)),
            scratch_shapes=[pltpu.VMEM((arity, tm, D), table.dtype),
                            pltpu.SemaphoreType.DMA((arity, tm))],
        ),
        compiler_params=pltpu.CompilerParams(dimension_semantics=("parallel",)),
    )(idx_flat, table, w3_bf, bias)
    return out[:B]
    # TODO(synk): double-buffer the row DMAs across grid steps to also hide per-step latency.


def functor_forward(table, idx, w, b, *, allow_resident=True):
    """Batched functor model: out[i] = concat(table[idx[i, a]] for a) @ w + b."""
    B, arity = idx.shape
    V, D = table.shape
    assert w.shape == (arity * D, D)
    w3_bf = w.reshape(arity, D, D).astype(jnp.bfloat16)
    b_f32 = b.reshape(1, D).astype(jnp.float32)
    if allow_resident and V <= _RESIDENT_MAX_ROWS:
        V_pad = _round_up(V, 256)
        table_bf = jnp.zeros((V_pad, D), jnp.bfloat16).at[:V].set(table.astype(jnp.bfloat16))
        return _functor_resident(_fold_table_w(table_bf, w3_bf), b_f32, idx)
    return _functor_fallback(table, idx, w3_bf, b_f32)


# ---------------- batched cosine / log similarity ----------------

def _cosine_kernel(a_ref, b_ref, o_ref):
    a = a_ref[...]                                  # (D, tb): reduction along sublanes
    b = b_ref[...]
    dot = jnp.sum(a * b, axis=0, keepdims=True)     # (1, tb) lane-dense
    na2 = jnp.sum(a * a, axis=0, keepdims=True)
    nb2 = jnp.sum(b * b, axis=0, keepdims=True)
    cos = dot * jax.lax.rsqrt(na2 * nb2 + 1e-12)    # rsqrt -> EUP slot
    p = jnp.clip(0.5 * (cos + 1.0), 1e-8, 1.0)      # clamp: log-probabilities stay <= 0
    o_ref[...] = jnp.log(p)


def cosine_log_scores(e1, e2):
    """e1, e2: [B, D] -> [B] log cosine-similarity scores (lane-dense kernel output)."""
    B, D = e1.shape
    tile = min(512, _round_up(max(B, 128), 128))
    B_pad = _round_up(max(B, tile), tile)
    # fused pad+transpose (single wrapper pass): pairs on lanes, reduction on sublanes
    e1t = jnp.zeros((D, B_pad), jnp.float32).at[:, :B].set(e1.astype(jnp.float32).T)
    e2t = jnp.zeros((D, B_pad), jnp.float32).at[:, :B].set(e2.astype(jnp.float32).T)
    out = pl.pallas_call(
        _cosine_kernel,
        out_shape=jax.ShapeDtypeStruct((1, B_pad), jnp.float32),
        grid=(B_pad // tile,),
        in_specs=[pl.BlockSpec((D, tile), lambda i: (0, i)),
                  pl.BlockSpec((D, tile), lambda i: (0, i))],
        out_specs=pl.BlockSpec((1, tile), lambda i: (0, i)),
        compiler_params=pltpu.CompilerParams(dimension_semantics=("parallel",)),
    )(e1t, e2t)
    return out[0, :B]


# ---------------- EmbeddingStore (JAX wrapper) ----------------

def _term_key(term):
    if isinstance(term, str):
        return ("c", term)
    name, args = term
    return ("f", name, tuple(_term_key(a) for a in args))


class EmbeddingStore:
    """JAX/Pallas port of deepsoftlog's EmbeddingStore.

    Terms: a constant is a python str (arity-0 Expr); a compound term is
    (functor_name, [arg_terms...]).
    """
    _SPECIAL = ("cpu", "cuda", "to")

    def __init__(self, ndim, constants, functors, key):
        self.ndim = ndim
        self.const_names = list(constants)
        self.name_to_idx = {n: i for i, n in enumerate(self.const_names)}
        V = len(self.const_names)
        keys = jax.random.split(key, 1 + len(functors))
        emb = jax.random.normal(keys[0], (V, ndim), jnp.float32) / math.sqrt(ndim)
        # extra all-zero row for dotted / device-like names (torch.zeros(ndim) path)
        self.table = jnp.concatenate([emb, jnp.zeros((1, ndim), jnp.float32)], axis=0)
        self.zero_idx = V
        self._table_bf = self.table.astype(jnp.bfloat16)   # cached bf16 table for fused kernels
        # per-signature functor model = Linear(arity*ndim -> ndim)
        # TODO(synk): the real functor model architecture comes from `initializer`;
        # a single Linear is used here as a deterministic stand-in.
        self.functor_params = {}
        self._w3_bf = {}          # cached [arity, D, D] bf16 weights
        self._bias = {}           # cached [1, D] f32 biases
        for sig, k in zip(functors, keys[1:]):
            name, arity = sig
            w = jax.random.normal(k, (arity * ndim, ndim), jnp.float32) / math.sqrt(arity * ndim)
            b = jnp.zeros((1, ndim), jnp.float32)
            key_str = str((name, arity))
            self.functor_params[key_str] = (w, b)
            self._w3_bf[key_str] = w.reshape(arity, ndim, ndim).astype(jnp.bfloat16)
            self._bias[key_str] = b
        self._cache = {}

    # --- constants ---
    def _constant_index(self, name):
        # TODO(synk): TensorTerm passthrough and runtime insertion of new constant
        # embeddings (ParameterDict growth) are host-side bookkeeping; unknown names
        # map to the zero row here.
        if "." in name or name in self._SPECIAL:
            return self.zero_idx
        return self.name_to_idx.get(name, self.zero_idx)

    def embed_constants_batch(self, names):
        idx = jnp.asarray([self._constant_index(n) for n in names], jnp.int32)
        return gather_embeddings(self.table, idx)

    # --- batched term embedding ---
    def embed_terms_batch(self, terms):
        """Embed a list of terms: one fused kernel call per (depth, signature) group."""
        nodes = {}                       # key -> (term, depth), deduplicated sub-terms

        def visit(t):
            k = _term_key(t)
            if k in nodes:
                return nodes[k][1]
            if isinstance(t, str):
                nodes[k] = (t, 0)
                return 0
            _, args = t
            d = 1 + max(visit(a) for a in args)
            nodes[k] = (t, d)
            return d

        for t in terms:
            visit(t)

        pos = {k: self._constant_index(t) for k, (t, d) in nodes.items() if d == 0}
        max_depth = max(d for _, d in nodes.values())
        n_new = sum(1 for _, d in nodes.values() if d > 0)
        if max_depth == 0 or n_new == 0:
            want = jnp.asarray([pos[_term_key(t)] for t in terms], jnp.int32)
            return gather_embeddings(self.table, want)

        V_base = self.table.shape[0]
        resident = (V_base + n_new) <= _RESIDENT_MAX_ROWS
        pool_bf = None
        if resident:
            # preallocated bf16 pool (from the cached bf16 base table), updated in place per depth
            cap = _round_up(V_base + n_new, 256)
            pool_bf = jnp.zeros((cap, self.ndim), jnp.bfloat16).at[:V_base].set(self._table_bf)

        new_blocks, offset = [], V_base
        for depth in range(1, max_depth + 1):
            groups = {}
            for k, (t, d) in nodes.items():
                if d != depth:
                    continue
                name, args = t
                groups.setdefault(str((name, len(args))), []).append((k, args))
            pool_f32 = None
            if not resident:
                pool_f32 = (jnp.concatenate([self.table] + new_blocks, axis=0)
                            if new_blocks else self.table)
            for sig, items in sorted(groups.items()):
                w3_bf, bias = self._w3_bf[sig], self._bias[sig]
                idx = jnp.asarray([[pos[_term_key(a)] for a in args] for _, args in items],
                                  jnp.int32)
                if resident:
                    rows = _functor_resident(_fold_table_w(pool_bf, w3_bf), bias, idx)
                    pool_bf = pool_bf.at[offset:offset + len(items)].set(
                        rows.astype(jnp.bfloat16))
                else:
                    rows = _functor_fallback(pool_f32, idx, w3_bf, bias)
                new_blocks.append(rows)
                for j, (k, _) in enumerate(items):
                    pos[k] = offset + j
                offset += len(items)
        pool_final = jnp.concatenate([self.table] + new_blocks, axis=0)   # built once
        want = jnp.asarray([pos[_term_key(t)] for t in terms], jnp.int32)
        return gather_embeddings(pool_final, want)

    # --- API matching the torch module ---
    def forward(self, term):
        return self.embed_terms_batch([term])[0]

    __call__ = forward

    def soft_unify_scores_batch(self, pairs, distance_metric):
        if distance_metric == "dummy":
            return jnp.full((len(pairs),), math.log(0.6), jnp.float32)
        terms = [t for pair in pairs for t in pair]
        embs = self.embed_terms_batch(terms)
        return cosine_log_scores(embs[0::2], embs[1::2])

    def soft_unify_score(self, t1, t2, distance_metric):
        if distance_metric == "dummy":
            return math.log(0.6)
        sign = frozenset([_term_key(t1), _term_key(t2)])
        if sign not in self._cache:
            self._cache[sign] = self.soft_unify_scores_batch([(t1, t2)], distance_metric)[0]
        return self._cache[sign]

    def clear_cache(self):
        self._cache = {}


# ---------------- demo / self-check ----------------

if __name__ == "__main__":
    key = jax.random.PRNGKey(0)
    constants = ["alice", "bob", "carol", "dave", "eve", "frank", "grace", "heidi"]
    functors = [("parent", 2), ("f", 1)]
    store = EmbeddingStore(NDIM, constants, functors, key)

    # 1) batched constant lookup (resident exact one-hot MXU gather)
    names = ["alice", "bob", "module.attr", "cuda"]
    embs = store.embed_constants_batch(names)
    jax.block_until_ready(embs)
    idx = jnp.asarray([store._constant_index(n) for n in names], jnp.int32)
    ref = jnp.take(store.table, idx, axis=0)
    assert embs.shape == (4, NDIM)
    assert jnp.allclose(embs, ref, atol=1e-6)
    assert float(jnp.abs(embs[2]).max()) == 0.0 and float(jnp.abs(embs[3]).max()) == 0.0

    # 1b) huge-vocabulary DMA-gather path, exercised directly on the small table
    embs_dma = _gather_dma(store.table, idx)
    jax.block_until_ready(embs_dma)
    assert jnp.allclose(embs_dma, ref, atol=1e-6)

    # 2) batch of same-signature functor terms -> ONE fused (folded onehot@(table@W)) kernel call
    terms = [("parent", ["alice", "bob"]),
             ("parent", ["carol", "dave"]),
             ("parent", ["eve", "frank"])]
    out = store.embed_terms_batch(terms)
    jax.block_until_ready(out)
    assert out.shape == (3, NDIM)
    w, bias = store.functor_params[str(("parent", 2))]
    for t, y in zip(terms, out):
        rows = [store.table[store._constant_index(a)] for a in t[1]]
        x = jnp.concatenate(rows)[None, :]
        ref_bf = jnp.dot(x.astype(jnp.bfloat16), w.astype(jnp.bfloat16),
                         preferred_element_type=jnp.float32) + bias
        ref_f32 = x @ w + bias
        assert jnp.allclose(y, ref_bf[0], atol=4e-3)
        assert jnp.allclose(y, ref_f32[0], atol=5e-2)

    # 3) nested term + dedup in one batch; single-term forward() still works
    nested = [("f", [("parent", ["alice", "bob"])]), ("parent", ["alice", "bob"]), "alice"]
    out3 = store.embed_terms_batch(nested)
    jax.block_until_ready(out3)
    assert out3.shape == (3, NDIM)
    assert jnp.allclose(out3[1], out[0], atol=1e-5)
    assert jnp.allclose(out3[2], store.table[store.name_to_idx["alice"]], atol=1e-6)
    single = store(("f", [("parent", ["alice", "bob"])]))
    jax.block_until_ready(single)
    assert single.shape == (NDIM,)
    assert jnp.allclose(single, out3[0], atol=1e-5)

    # 4) fused large-vocabulary fallback (rows DMA'd inside the matmul kernel)
    idx2 = jnp.asarray([[store.name_to_idx[a] for a in t[1]] for t in terms], jnp.int32)
    out_fb = functor_forward(store.table, idx2, w, bias, allow_resident=False)
    jax.block_until_ready(out_fb)
    assert out_fb.shape == (3, NDIM)
    assert jnp.allclose(out_fb, out, atol=4e-3)

    # 5) soft unify scores (batched lane-dense cosine kernel)
    s_dummy = store.soft_unify_score("alice", "bob", "dummy")
    assert abs(s_dummy - math.log(0.6)) < 1e-9
    pairs = [("alice", "bob"),
             ("carol", ("parent", ["alice", "bob"])),
             ("module.attr", "alice")]
    scores = store.soft_unify_scores_batch(pairs, "cosine")
    jax.block_until_ready(scores)
    assert scores.shape == (3,)
    a = store.table[store.name_to_idx["alice"]]
    b = store.table[store.name_to_idx["bob"]]
    c = jnp.sum(a * b) / (jnp.linalg.norm(a) * jnp.linalg.norm(b) + 1e-8)
    s_ref = jnp.log(0.5 * (c + 1.0) + 1e-8)
    assert abs(float(scores[0]) - float(s_ref)) < 1e-4
    assert abs(float(scores[2]) - math.log(0.5)) < 1e-4   # zero embedding -> cos = 0
    assert float(jnp.max(scores)) <= 0.0                  # clamped log-probabilities
    s1 = store.soft_unify_score("alice", "bob", "cosine")
    assert abs(float(s1) - float(s_ref)) < 1e-4

    print("KERNEL_OK")
</pallas_src>

<mosaic_0001>
module attributes {stable_mosaic.version = 11 : i64} {
  func.func @_gather_resident_kernel(%arg0: i32, %arg1: memref<8x1xi32, #tpu.memory_space<vmem>>, %arg2: memref<256x128xf32, #tpu.memory_space<vmem>>, %arg3: memref<8x128xf32, #tpu.memory_space<vmem>>) attributes {dimension_semantics = [#tpu.dimension_semantics<parallel>], iteration_bounds = array<i64: 1>, scalar_prefetch = 0 : i64, scratch_operands = 0 : i64, tpu.core_type = #tpu.core_type<tc>, window_params = [{transform_indices = @transform_0, window_bounds = array<i64: 8, 1>}, {pipeline_mode = #tpu.pipeline_mode<synchronous>, transform_indices = @transform_1, window_bounds = array<i64: 256, 128>}, {transform_indices = @transform_2, window_bounds = array<i64: 8, 128>}]} {
    %c0 = arith.constant 0 : index
    %c0_0 = arith.constant 0 : index
    %0 = vector.load %arg1[%c0, %c0_0] : memref<8x1xi32, #tpu.memory_space<vmem>>, vector<8x1xi32>
    %c0_1 = arith.constant 0 : index
    %c0_2 = arith.constant 0 : index
    %1 = vector.load %arg2[%c0_1, %c0_2] : memref<256x128xf32, #tpu.memory_space<vmem>>, vector<256x128xf32>
    %2 = arith.truncf %1 : vector<256x128xf32> to vector<256x128xbf16>
    %3 = arith.extf %2 : vector<256x128xbf16> to vector<256x128xf32>
    %4 = arith.subf %1, %3 : vector<256x128xf32>
    %5 = arith.truncf %4 : vector<256x128xf32> to vector<256x128xbf16>
    %6 = arith.extf %5 : vector<256x128xbf16> to vector<256x128xf32>
    %7 = arith.subf %4, %6 : vector<256x128xf32>
    %8 = arith.truncf %7 : vector<256x128xf32> to vector<256x128xbf16>
    %9 = tpu.iota {dimensions = array<i32: 1>} : vector<8x256xi32>
    %10 = vector.broadcast %0 : vector<8x1xi32> to vector<8x256xi32>
    %11 = arith.cmpi eq, %9, %10 : vector<8x256xi32>
    %12 = arith.extui %11 : vector<8x256xi1> to vector<8x256xi32>
    %13 = arith.sitofp %12 : vector<8x256xi32> to vector<8x256xf32>
    %14 = arith.truncf %13 : vector<8x256xf32> to vector<8x256xbf16>
    %cst = arith.constant dense<0.000000e+00> : vector<8x128xf32>
    %15 = tpu.matmul %14, %2, %cst {dimension_numbers = #tpu.dot_dimension_numbers<[1], [0], [0], [1], [0, 0, 1, 1], [], []>} : vector<8x256xbf16>, vector<256x128xbf16>, vector<8x128xf32> -> vector<8x128xf32>
    %cst_3 = arith.constant dense<0.000000e+00> : vector<8x128xf32>
    %16 = tpu.matmul %14, %5, %cst_3 {dimension_numbers = #tpu.dot_dimension_numbers<[1], [0], [0], [1], [0, 0, 1, 1], [], []>} : vector<8x256xbf16>, vector<256x128xbf16>, vector<8x128xf32> -> vector<8x128xf32>
    %17 = arith.addf %15, %16 : vector<8x128xf32>
    %cst_4 = arith.constant dense<0.000000e+00> : vector<8x128xf32>
    %18 = tpu.matmul %14, %8, %cst_4 {dimension_numbers = #tpu.dot_dimension_numbers<[1], [0], [0], [1], [0, 0, 1, 1], [], []>} : vector<8x256xbf16>, vector<256x128xbf16>, vector<8x128xf32> -> vector<8x128xf32>
    %19 = arith.addf %17, %18 : vector<8x128xf32>
    %c0_5 = arith.constant 0 : index
    %c0_6 = arith.constant 0 : index
    %20 = vector.load %arg3[%c0_5, %c0_6] : memref<8x128xf32, #tpu.memory_space<vmem>>, vector<8x128xf32>
    tpu.vector_store %arg3[%c0_5, %c0_6], %19 {strides = array<i32>} : memref<8x128xf32, #tpu.memory_space<vmem>>, vector<8x128xf32>,
    return
  }
  func.func @transform_0(%arg0: i32) -> (i32, i32) {
    %c0_i32 = arith.constant 0 : i32
    %c0_i32_0 = arith.constant 0 : i32
    return %arg0, %c0_i32 : i32, i32
  }
  func.func @transform_1(%arg0: i32) -> (i32, i32) {
    %c0_i32 = arith.constant 0 : i32
    %c0_i32_0 = arith.constant 0 : i32
    %c0_i32_1 = arith.constant 0 : i32
    return %c0_i32, %c0_i32_0 : i32, i32
  }
  func.func @transform_2(%arg0: i32) -> (i32, i32) {
    %c0_i32 = arith.constant 0 : i32
    %c0_i32_0 = arith.constant 0 : i32
    return %arg0, %c0_i32 : i32, i32
  }
}

</mosaic_0001>

<llo_original>
// kernel: tpu_custom_call.1
$region0: #{tpu_custom_call.1}
  #allocation0 [shape = 'u32[]', space=smem, size = 0x4, offset = 0x4, fixed_abs, tag = 'smem constant byte address 0x4 - core index']
  #allocation1 [shape = 'u32[144,128]{1,0:T(1,128)}', space=vmem, size = 0x12000, scoped, tag = 'internal scratch']
  %s0 = inlined_call_operand.vmem [shape: s32[8,1], index: 0, kind: input, shape index: {}]
  %s1 = inlined_call_operand.hbm [shape: f32[256,128], index: 1, kind: input, shape index: {}]
  %s2 = inlined_call_operand.hbm [shape: f32[8,128], index: 2, kind: output, shape index: {}]
  %s3 = sld [smem:[#allocation0]]
  $region22: #{tpu_custom_call.1} parent=0
    _
  %s5 = ssub.s32 1, %s3
  %s6 = scalar_select 0, %s5, %s3
  $region1: #{tpu_custom_call.1} parent=0
    #allocation2 [shape = 'u8[131072]{0}', space=vmem, size = 0x20000, scoped, tag = 'input window, operand 1, single buffered']
    #allocation3 [shape = 's32[1]{0}', space=sflag, size = 0x4, scoped, tag = 'scoped memory for tpu_custom_call.1']
    #allocation4 [shape = 's32[1]{0}', space=sflag, size = 0x4, scoped, tag = 'scoped memory for tpu_custom_call.1']
    #allocation5 [shape = 'u8[4096]{0}', space=vmem, size = 0x1000, scoped, tag = 'output window, operand 0, single buffered']
    %7 = vsyncpa [#allocation3], 0
    %8 = vsyncpa [#allocation4], 0
    // Predicated region
    $region2: #{tpu_custom_call.1} parent=1 // pred_check
      _
    $region3: #{tpu_custom_call.1} parent=1 // pred_check_branch
      %10 = sbr.rel (0) target = $region5
    $region4: #{tpu_custom_call.1} parent=1 // pred_region
      _
    $region5: #{tpu_custom_call.1} parent=1 // pred_fallthru
      _
    // Predicated region
    $region6: #{tpu_custom_call.1} parent=1 // pred_check
      _
    $region7: #{tpu_custom_call.1} parent=1 // pred_check_branch
      %12 = sbr.rel (0) target = $region9
    $region8: #{tpu_custom_call.1} parent=1 // pred_region
      %s14 = ssub.s32 4096, 4096
      %15 = vsyncadd [#allocation3], %s14
      %s16 = sshll.u32 [#allocation2], 4
      %s17 = int_to_ptr.vmem [resolvable:$true] %s16
      %22 = dma.hbm_to_vmem [thread:$0]  %s1, 4096, %s17, [#allocation3], 128, 128, 8
    $region9: #{tpu_custom_call.1} parent=1 // pred_fallthru
      _
    // Predicated region
    $region10: #{tpu_custom_call.1} parent=1 // pred_check
      _
    $region11: #{tpu_custom_call.1} parent=1 // pred_check_branch
      %24 = sbr.rel (0) target = $region13
    $region12: #{tpu_custom_call.1} parent=1 // pred_region
      %25 = dma.done [#allocation3], 4096
    $region13: #{tpu_custom_call.1} parent=1 // pred_fallthru
      _
    %v27 = vld [vmem:[%s0] sm:$0xff]
    %v28 = vld [vmem:[#allocation2] sm:$0xff]
    %v29 = vld [vmem:[#allocation2 + $0x8] sm:$0xff]
    %v30 = vld [vmem:[#allocation2 + $0x10] sm:$0xff]
    %v31 = vld [vmem:[#allocation2 + $0x18] sm:$0xff]
    %v32 = vld [vmem:[#allocation2 + $0x20] sm:$0xff]
    %v33 = vld [vmem:[#allocation2 + $0x28] sm:$0xff]
    %v34 = vld [vmem:[#allocation2 + $0x30] sm:$0xff]
    %v35 = vld [vmem:[#allocation2 + $0x38] sm:$0xff]
    %v36 = vld [vmem:[#allocation2 + $0x40] sm:$0xff]
    %v37 = vld [vmem:[#allocation2 + $0x48] sm:$0xff]
    %v38 = vld [vmem:[#allocation2 + $0x50] sm:$0xff]
    %v39 = vld [vmem:[#allocation2 + $0x58] sm:$0xff]
    %v40 = vld [vmem:[#allocation2 + $0x60] sm:$0xff]
    %v41 = vld [vmem:[#allocation2 + $0x68] sm:$0xff]
    %v42 = vld [vmem:[#allocation2 + $0x70] sm:$0xff]
    %v43 = vld [vmem:[#allocation2 + $0x78] sm:$0xff]
    %v44 = vld [vmem:[#allocation2 + $0x80] sm:$0xff]
    %v45 = vld [vmem:[#allocation2 + $0x88] sm:$0xff]
    %v46 = vld [vmem:[#allocation2 + $0x90] sm:$0xff]
    %v47 = vld [vmem:[#allocation2 + $0x98] sm:$0xff]
    %v48 = vld [vmem:[#allocation2 + $0xa0] sm:$0xff]
    %v49 = vld [vmem:[#allocation2 + $0xa8] sm:$0xff]
    %v50 = vld [vmem:[#allocation2 + $0xb0] sm:$0xff]
    %v51 = vld [vmem:[#allocation2 + $0xb8] sm:$0xff]
    %v52 = vld [vmem:[#allocation2 + $0xc0] sm:$0xff]
    %v53 = vld [vmem:[#allocation2 + $0xc8] sm:$0xff]
    %v54 = vld [vmem:[#allocation2 + $0xd0] sm:$0xff]
    %v55 = vld [vmem:[#allocation2 + $0xd8] sm:$0xff]
    %v56 = vld [vmem:[#allocation2 + $0xe0] sm:$0xff]
    %v57 = vld [vmem:[#allocation2 + $0xe8] sm:$0xff]
    %v58 = vld [vmem:[#allocation2 + $0xf0] sm:$0xff]
    %v59 = vld [vmem:[#allocation2 + $0xf8] sm:$0xff]
    %v60 = vpack.c.bf16 %v29, %v28
    %v61 = vpack.c.bf16 %v31, %v30
    %v62 = vpack.c.bf16 %v33, %v32
    %v63 = vpack.c.bf16 %v35, %v34
    %v64 = vpack.c.bf16 %v37, %v36
    %v65 = vpack.c.bf16 %v39, %v38
    %v66 = vpack.c.bf16 %v41, %v40
    %v67 = vpack.c.bf16 %v43, %v42
    %v68 = vpack.c.bf16 %v45, %v44
    %v69 = vpack.c.bf16 %v47, %v46
    %v70 = vpack.c.bf16 %v49, %v48
    %v71 = vpack.c.bf16 %v51, %v50
    %v72 = vpack.c.bf16 %v53, %v52
    %v73 = vpack.c.bf16 %v55, %v54
    %v74 = vpack.c.bf16 %v57, %v56
    %v75 = vpack.c.bf16 %v59, %v58
    %v76 = vunpack.c.l.bf16 %v60
    %v77 = vunpack.c.h.bf16 %v60
    %v78 = vunpack.c.l.bf16 %v61
    %v79 = vunpack.c.h.bf16 %v61
    %v80 = vunpack.c.l.bf16 %v62
    %v81 = vunpack.c.h.bf16 %v62
    %v82 = vunpack.c.l.bf16 %v63
    %v83 = vunpack.c.h.bf16 %v63
    %v84 = vunpack.c.l.bf16 %v64
    %v85 = vunpack.c.h.bf16 %v64
    %v86 = vunpack.c.l.bf16 %v65
    %v87 = vunpack.c.h.bf16 %v65
    %v88 = vunpack.c.l.bf16 %v66
    %v89 = vunpack.c.h.bf16 %v66
    %v90 = vunpack.c.l.bf16 %v67
    %v91 = vunpack.c.h.bf16 %v67
    %v92 = vunpack.c.l.bf16 %v68
    %v93 = vunpack.c.h.bf16 %v68
    %v94 = vunpack.c.l.bf16 %v69
    %v95 = vunpack.c.h.bf16 %v69
    %v96 = vunpack.c.l.bf16 %v70
    %v97 = vunpack.c.h.bf16 %v70
    %v98 = vunpack.c.l.bf16 %v71
    %v99 = vunpack.c.h.bf16 %v71
    %v100 = vunpack.c.l.bf16 %v72
    %v101 = vunpack.c.h.bf16 %v72
    %v102 = vunpack.c.l.bf16 %v73
    %v103 = vunpack.c.h.bf16 %v73
    %v104 = vunpack.c.l.bf16 %v74
    %v105 = vunpack.c.h.bf16 %v74
    %v106 = vunpack.c.l.bf16 %v75
    %v107 = vunpack.c.h.bf16 %v75
    %v108 = vsub.f32 %v28, %v76
    %v109 = vsub.f32 %v29, %v77
    %v110 = vsub.f32 %v30, %v78
    %v111 = vsub.f32 %v31, %v79
    %v112 = vsub.f32 %v32, %v80
    %v113 = vsub.f32 %v33, %v81
    %v114 = vsub.f32 %v34, %v82
    %v115 = vsub.f32 %v35, %v83
    %v116 = vsub.f32 %v36, %v84
    %v117 = vsub.f32 %v37, %v85
    %v118 = vsub.f32 %v38, %v86
    %v119 = vsub.f32 %v39, %v87
    %v120 = vsub.f32 %v40, %v88
    %v121 = vsub.f32 %v41, %v89
    %v122 = vsub.f32 %v42, %v90
    %v123 = vsub.f32 %v43, %v91
    %v124 = vsub.f32 %v44, %v92
    %v125 = vsub.f32 %v45, %v93
    %v126 = vsub.f32 %v46, %v94
    %v127 = vsub.f32 %v47, %v95
    %v128 = vsub.f32 %v48, %v96
    %v129 = vsub.f32 %v49, %v97
    %v130 = vsub.f32 %v50, %v98
    %v131 = vsub.f32 %v51, %v99
    %v132 = vsub.f32 %v52, %v100
    %v133 = vsub.f32 %v53, %v101
    %v134 = vsub.f32 %v54, %v102
    %v135 = vsub.f32 %v55, %v103
    %v136 = vsub.f32 %v56, %v104
    %v137 = vsub.f32 %v57, %v105
    %v138 = vsub.f32 %v58, %v106
    %v139 = vsub.f32 %v59, %v107
    %v140 = vpack.c.bf16 %v109, %v108
    %v141 = vpack.c.bf16 %v111, %v110
    %v142 = vpack.c.bf16 %v113, %v112
    %v143 = vpack.c.bf16 %v115, %v114
    %v144 = vpack.c.bf16 %v117, %v116
    %v145 = vpack.c.bf16 %v119, %v118
    %v146 = vpack.c.bf16 %v121, %v120
    %v147 = vpack.c.bf16 %v123, %v122
    %v148 = vpack.c.bf16 %v125, %v124
    %v149 = vpack.c.bf16 %v127, %v126
    %v150 = vpack.c.bf16 %v129, %v128
    %v151 = vpack.c.bf16 %v131, %v130
    %v152 = vpack.c.bf16 %v133, %v132
    %v153 = vpack.c.bf16 %v135, %v134
    %v154 = vpack.c.bf16 %v137, %v136
    %v155 = vpack.c.bf16 %v139, %v138
    %v156 = vunpack.c.l.bf16 %v140
    %v157 = vunpack.c.h.bf16 %v140
    %v158 = vunpack.c.l.bf16 %v141
    %v159 = vunpack.c.h.bf16 %v141
    %v160 = vunpack.c.l.bf16 %v142
    %v161 = vunpack.c.h.bf16 %v142
    %v162 = vunpack.c.l.bf16 %v143
    %v163 = vunpack.c.h.bf16 %v143
    %v164 = vunpack.c.l.bf16 %v144
    %v165 = vunpack.c.h.bf16 %v144
    %v166 = vunpack.c.l.bf16 %v145
    %v167 = vunpack.c.h.bf16 %v145
    %v168 = vunpack.c.l.bf16 %v146
    %v169 = vunpack.c.h.bf16 %v146
    %v170 = vunpack.c.l.bf16 %v147
    %v171 = vunpack.c.h.bf16 %v147
    %v172 = vunpack.c.l.bf16 %v148
    %v173 = vunpack.c.h.bf16 %v148
    %v174 = vunpack.c.l.bf16 %v149
    %v175 = vunpack.c.h.bf16 %v149
    %v176 = vunpack.c.l.bf16 %v150
    %v177 = vunpack.c.h.bf16 %v150
    %v178 = vunpack.c.l.bf16 %v151
    %v179 = vunpack.c.h.bf16 %v151
    %v180 = vunpack.c.l.bf16 %v152
    %v181 = vunpack.c.h.bf16 %v152
    %v182 = vunpack.c.l.bf16 %v153
    %v183 = vunpack.c.h.bf16 %v153
    %v184 = vunpack.c.l.bf16 %v154
    %v185 = vunpack.c.h.bf16 %v154
    %v186 = vunpack.c.l.bf16 %v155
    %v187 = vunpack.c.h.bf16 %v155
    %v188 = vsub.f32 %v108, %v156
    %v189 = vsub.f32 %v109, %v157
    %v190 = vsub.f32 %v110, %v158
    %v191 = vsub.f32 %v111, %v159
    %v192 = vsub.f32 %v112, %v160
    %v193 = vsub.f32 %v113, %v161
    %v194 = vsub.f32 %v114, %v162
    %v195 = vsub.f32 %v115, %v163
    %v196 = vsub.f32 %v116, %v164
    %v197 = vsub.f32 %v117, %v165
    %v198 = vsub.f32 %v118, %v166
    %v199 = vsub.f32 %v119, %v167
    %v200 = vsub.f32 %v120, %v168
    %v201 = vsub.f32 %v121, %v169
    %v202 = vsub.f32 %v122, %v170
    %v203 = vsub.f32 %v123, %v171
    %v204 = vsub.f32 %v124, %v172
    %v205 = vsub.f32 %v125, %v173
    %v206 = vsub.f32 %v126, %v174
    %v207 = vsub.f32 %v127, %v175
    %v208 = vsub.f32 %v128, %v176
    %v209 = vsub.f32 %v129, %v177
    %v210 = vsub.f32 %v130, %v178
    %v211 = vsub.f32 %v131, %v179
    %v212 = vsub.f32 %v132, %v180
    %v213 = vsub.f32 %v133, %v181
    %v214 = vsub.f32 %v134, %v182
    %v215 = vsub.f32 %v135, %v183
    %v216 = vsub.f32 %v136, %v184
    %v217 = vsub.f32 %v137, %v185
    %v218 = vsub.f32 %v138, %v186
    %v219 = vsub.f32 %v139, %v187
    %v220 = vpack.c.bf16 %v189, %v188
    %v221 = vpack.c.bf16 %v191, %v190
    %v222 = vpack.c.bf16 %v193, %v192
    %v223 = vpack.c.bf16 %v195, %v194
    %v224 = vpack.c.bf16 %v197, %v196
    %v225 = vpack.c.bf16 %v199, %v198
    %v226 = vpack.c.bf16 %v201, %v200
    %v227 = vpack.c.bf16 %v203, %v202
    %v228 = vpack.c.bf16 %v205, %v204
    %v229 = vpack.c.bf16 %v207, %v206
    %v230 = vpack.c.bf16 %v209, %v208
    %v231 = vpack.c.bf16 %v211, %v210
    %v232 = vpack.c.bf16 %v213, %v212
    %v233 = vpack.c.bf16 %v215, %v214
    %v234 = vpack.c.bf16 %v217, %v216
    %v235 = vpack.c.bf16 %v219, %v218
    %v236 = vlaneseq
    %v237 = vand.u32 %v236, 127
    %v238 = vadd.s32 %v237, 128
    %239 = vset.pattern.permute.xlu0 0
    %240 = vperm.xlu0 %239, %v27
    %v241 = vpop.permute.xlu0 %240
    %vm242 = vcmp.eq.s32.totalorder %v237, %v241
    %vm243 = vcmp.eq.s32.totalorder %v238, %v241
    %v244 = vsel %vm242, 1, 0
    %v245 = vsel %vm243, 1, 0
    %v246 = vcvt.s32.f32 %v244
    %v247 = vcvt.s32.f32 %v245
    %v248 = vpack.c.bf16 %v246, %v246
    %v249 = vpack.c.bf16 %v247, %v247
    %250 = vmatprep.subr.bf16.mxu0 0
    %251 = vmatpush1.bf16.msra.mxu0 %v147
    %252 = vmatprep.subr.bf16.mxu0 0
    %253 = vmatpush1.bf16.msra.mxu0 %v146
    %254 = vmatprep.subr.bf16.mxu0 0
    %255 = vmatpush1.bf16.msra.mxu0 %v145
    %256 = vmatprep.subr.bf16.mxu0 0
    %257 = vmatpush1.bf16.msra.mxu0 %v144
    %258 = vmatprep.subr.bf16.mxu0 0
    %259 = vmatpush1.bf16.msra.mxu0 %v143
    %260 = vmatprep.subr.bf16.mxu0 0
    %261 = vmatpush1.bf16.msra.mxu0 %v142
    %262 = vmatprep.subr.bf16.mxu0 0
    %263 = vmatpush1.bf16.msra.mxu0 %v141
    %264 = vmatprep.subr.bf16.mxu0 0
    %265 = vmatpush1.bf16.msra.mxu0 %v140
    %266 = vmatprep.subr.bf16.mxu0 0
    %267 = vmatpush2.bf16.msra.mxu0 %v155
    %268 = vmatprep.subr.bf16.mxu0 0
    %269 = vmatpush2.bf16.msra.mxu0 %v154
    %270 = vmatprep.subr.bf16.mxu0 0
    %271 = vmatpush2.bf16.msra.mxu0 %v153
    %272 = vmatprep.subr.bf16.mxu0 0
    %273 = vmatpush2.bf16.msra.mxu0 %v152
    %274 = vmatprep.subr.bf16.mxu0 0
    %275 = vmatpush2.bf16.msra.mxu0 %v151
    %276 = vmatprep.subr.bf16.mxu0 0
    %277 = vmatpush2.bf16.msra.mxu0 %v150
    %278 = vmatprep.subr.bf16.mxu0 0
    %279 = vmatpush2.bf16.msra.mxu0 %v149
    %280 = vmatprep.subr.bf16.mxu0 0
    %281 = vmatpush2.bf16.msra.mxu0 %v148
    %282 = vmatprep.mubr.bf16.mxu0 %v249
    %283 = vmatmul.mubr.bf16.gmra.mxu0 %v248
    %v284 = vpop.f32.mrf.mxu0
    %v285 = vadd.f32 0.0, %v284
    %v286 = vpop.f32.mrf.mxu0
    %v287 = vpop.f32.mrf.mxu0
    %v288 = vpop.f32.mrf.mxu0
    %289 = vdwg.mxu0
    %290 = vmatprep.subr.bf16.mxu0 0
    %291 = vmatpush1.bf16.msra.mxu0 %v67
    %292 = vmatprep.subr.bf16.mxu0 0
    %293 = vmatpush1.bf16.msra.mxu0 %v66
    %294 = vmatprep.subr.bf16.mxu0 0
    %295 = vmatpush1.bf16.msra.mxu0 %v65
    %296 = vmatprep.subr.bf16.mxu0 0
    %297 = vmatpush1.bf16.msra.mxu0 %v64
    %298 = vmatprep.subr.bf16.mxu0 0
    %299 = vmatpush1.bf16.msra.mxu0 %v63
    %300 = vmatprep.subr.bf16.mxu0 0
    %301 = vmatpush1.bf16.msra.mxu0 %v62
    %302 = vmatprep.subr.bf16.mxu0 0
    %303 = vmatpush1.bf16.msra.mxu0 %v61
    %304 = vmatprep.subr.bf16.mxu0 0
    %305 = vmatpush1.bf16.msra.mxu0 %v60
    %306 = vmatprep.subr.bf16.mxu0 0
    %307 = vmatpush2.bf16.msra.mxu0 %v75
    %308 = vmatprep.subr.bf16.mxu0 0
    %309 = vmatpush2.bf16.msra.mxu0 %v74
    %310 = vmatprep.subr.bf16.mxu0 0
    %311 = vmatpush2.bf16.msra.mxu0 %v73
    %312 = vmatprep.subr.bf16.mxu0 0
    %313 = vmatpush2.bf16.msra.mxu0 %v72
    %314 = vmatprep.subr.bf16.mxu0 0
    %315 = vmatpush2.bf16.msra.mxu0 %v71
    %316 = vmatprep.subr.bf16.mxu0 0
    %317 = vmatpush2.bf16.msra.mxu0 %v70
    %318 = vmatprep.subr.bf16.mxu0 0
    %319 = vmatpush2.bf16.msra.mxu0 %v69
    %320 = vmatprep.subr.bf16.mxu0 0
    %321 = vmatpush2.bf16.msra.mxu0 %v68
    %322 = vmatprep.mubr.bf16.mxu0 %v249
    %323 = vmatmul.mubr.bf16.gmra.mxu0 %v248
    %v324 = vpop.f32.mrf.mxu0
    %v325 = vadd.f32 %v285, %v324
    %v326 = vpop.f32.mrf.mxu0
    %v327 = vpop.f32.mrf.mxu0
    %v328 = vpop.f32.mrf.mxu0
    %329 = vdwg.mxu0
    %330 = vmatprep.subr.bf16.mxu0 0
    %331 = vmatpush1.bf16.msra.mxu0 %v227
    %332 = vmatprep.subr.bf16.mxu0 0
    %333 = vmatpush1.bf16.msra.mxu0 %v226
    %334 = vmatprep.subr.bf16.mxu0 0
    %335 = vmatpush1.bf16.msra.mxu0 %v225
    %336 = vmatprep.subr.bf16.mxu0 0
    %337 = vmatpush1.bf16.msra.mxu0 %v224
    %338 = vmatprep.subr.bf16.mxu0 0
    %339 = vmatpush1.bf16.msra.mxu0 %v223
    %340 = vmatprep.subr.bf16.mxu0 0
    %341 = vmatpush1.bf16.msra.mxu0 %v222
    %342 = vmatprep.subr.bf16.mxu0 0
    %343 = vmatpush1.bf16.msra.mxu0 %v221
    %344 = vmatprep.subr.bf16.mxu0 0
    %345 = vmatpush1.bf16.msra.mxu0 %v220
    %346 = vmatprep.subr.bf16.mxu0 0
    %347 = vmatpush2.bf16.msra.mxu0 %v235
    %348 = vmatprep.subr.bf16.mxu0 0
    %349 = vmatpush2.bf16.msra.mxu0 %v234
    %350 = vmatprep.subr.bf16.mxu0 0
    %351 = vmatpush2.bf16.msra.mxu0 %v233
    %352 = vmatprep.subr.bf16.mxu0 0
    %353 = vmatpush2.bf16.msra.mxu0 %v232
    %354 = vmatprep.subr.bf16.mxu0 0
    %355 = vmatpush2.bf16.msra.mxu0 %v231
    %356 = vmatprep.subr.bf16.mxu0 0
    %357 = vmatpush2.bf16.msra.mxu0 %v230
    %358 = vmatprep.subr.bf16.mxu0 0
    %359 = vmatpush2.bf16.msra.mxu0 %v229
    %360 = vmatprep.subr.bf16.mxu0 0
    %361 = vmatpush2.bf16.msra.mxu0 %v228
    %362 = vmatprep.mubr.bf16.mxu0 %v249
    %363 = vmatmul.mubr.bf16.gmra.mxu0 %v248
    %v364 = vpop.f32.mrf.mxu0
    %v365 = vadd.f32 0.0, %v364
    %v366 = vpop.f32.mrf.mxu0
    %v367 = vpop.f32.mrf.mxu0
    %v368 = vpop.f32.mrf.mxu0
    %369 = vdwg.mxu0
    %v370 = vadd.f32 %v325, %v365
    %371 = vst [vmem:[#allocation5] sm:$0xff] %v370
    // Predicated region
    $region14: #{tpu_custom_call.1} parent=1 // pred_check
      _
    $region15: #{tpu_custom_call.1} parent=1 // pred_check_branch
      %373 = sbr.rel (0) target = $region17
    $region16: #{tpu_custom_call.1} parent=1 // pred_region
      %s375 = ssub.s32 128, 128
      %376 = vsyncadd [#allocation4], %s375
      %s378 = sshll.u32 [#allocation5], 4
      %s379 = int_to_ptr.vmem [resolvable:$true] %s378
      %381 = dma.vmem_to_hbm [thread:$0]  %s379, 128, %s2, [#allocation4]
    $region17: #{tpu_custom_call.1} parent=1 // pred_fallthru
      _
    // Predicated region
    $region18: #{tpu_custom_call.1} parent=1 // pred_check
      _
    $region19: #{tpu_custom_call.1} parent=1 // pred_check_branch
      %383 = sbr.rel (0) target = $region21
    $region20: #{tpu_custom_call.1} parent=1 // pred_region
      %384 = dma.done [#allocation4], 128
    $region21: #{tpu_custom_call.1} parent=1 // pred_fallthru
      _
    %385 = vsyncpa [#allocation3], 1
    %386 = vsyncpa [#allocation4], 1

</llo_original>
